<compile_context>
chip_gen: v7x
topology: tpu7x:2x2x1
jax: 0.10.0
libtpu: 0.0.40
codegen_flags: <defaults>
</compile_context>

<pallas_src>
import functools
import random

import jax
import jax.numpy as jnp
from jax.experimental import pallas as pl
from jax.experimental.pallas import tpu as pltpu


def _round_up(x, m):
    return -(-x // m) * m


# ---------------------------------------------------------------------------
# Pallas kernel: one block of B (n,c)-planes, out[b] = Wy @ img[b] @ WxT
# ---------------------------------------------------------------------------
def _resize_block_kernel(img_ref, wy_ref, wxt_ref, out_ref):
    """img_ref: (B, H_in, W_in); wy_ref: (H_out, H_in); wxt_ref: (W_in, Wp);
    out_ref: (B, H_out, Wp) with Wp a multiple of 128 (lane-dense stores)."""
    b, h_in, w_in = img_ref.shape
    wp = wxt_ref.shape[1]

    x = img_ref[...]                       # (B, H_in, W_in), compute dtype
    wxt = wxt_ref[...]                     # (W_in, Wp)
    wy = wy_ref[...]                       # (H_out, H_in)

    # Pass 1 -- width resize: one large lane-dense MXU matmul over all B planes.
    t = jnp.dot(x.reshape(b * h_in, w_in), wxt,
                preferred_element_type=jnp.float32)        # (B*H_in, Wp) f32
    t = t.astype(x.dtype).reshape(b, h_in, wp)

    # Pass 2 -- height resize: per-plane 2-D matmuls (N = Wp is 128-aligned).
    for i in range(b):
        out_ref[i] = jnp.dot(
            wy, t[i], preferred_element_type=jnp.float32).astype(out_ref.dtype)


# ---------------------------------------------------------------------------
# Block sizing / pallas_call wrapper
# ---------------------------------------------------------------------------
_VMEM_LIMIT_BYTES = 48 * 1024 * 1024   # fits v7x's 64 MiB VMEM with headroom
_VMEM_BLOCK_BUDGET = 32 * 1024 * 1024  # target working-set for block sizing
_MAX_BLOCK_B = 32                      # cap in-kernel unrolling


def _choose_block_b(nc, h_in, w_in, h_out, wp, cbytes, obytes):
    weights = 2 * (h_out * h_in + w_in * wp) * cbytes
    per_plane = (2 * h_in * w_in * cbytes      # double-buffered input block
                 + 2 * h_out * wp * obytes     # double-buffered output block
                 + h_in * wp * 4               # f32 width-pass intermediate
                 + h_out * wp * 4)             # f32 height-pass result
    b = max(1, (_VMEM_BLOCK_BUDGET - weights) // per_plane)
    b = min(b, nc, _MAX_BLOCK_B)
    if nc >= 2:                                # keep >= 2 grid steps (v7x: 2 TCs)
        b = min(b, _round_up(nc, 2) // 2)
    return int(max(1, b))


def _resize_planes(img_flat, wy, wxt, block_b):
    """img_flat: (NC, H_in, W_in) -> (NC, H_out, Wp) float32 via Pallas."""
    nc, h_in, w_in = img_flat.shape
    h_out = wy.shape[0]
    wp = wxt.shape[1]

    nc_pad = _round_up(nc, block_b)
    if nc_pad != nc:
        img_flat = jnp.pad(img_flat, ((0, nc_pad - nc), (0, 0), (0, 0)))

    out = pl.pallas_call(
        _resize_block_kernel,
        out_shape=jax.ShapeDtypeStruct((nc_pad, h_out, wp), jnp.float32),
        grid_spec=pltpu.PrefetchScalarGridSpec(
            num_scalar_prefetch=0,
            grid=(nc_pad // block_b,),
            in_specs=[
                pl.BlockSpec((block_b, h_in, w_in), lambda i: (i, 0, 0)),
                pl.BlockSpec((h_out, h_in), lambda i: (0, 0)),
                pl.BlockSpec((w_in, wp), lambda i: (0, 0)),
            ],
            out_specs=pl.BlockSpec((block_b, h_out, wp), lambda i: (i, 0, 0)),
        ),
        compiler_params=pltpu.CompilerParams(
            dimension_semantics=("parallel",),
            vmem_limit_bytes=_VMEM_LIMIT_BYTES),
    )(img_flat, wy, wxt)
    return out[:nc]


# ---------------------------------------------------------------------------
# Glue: bilinear interpolation matrices + ARP output size
# ---------------------------------------------------------------------------
def _bilinear_matrix(in_size, out_size):
    """(out_size, in_size) bilinear interpolation matrix
    (PyTorch interpolate semantics: align_corners=False, antialias=False)."""
    scale = in_size / out_size
    dst = jnp.arange(out_size, dtype=jnp.float32)
    src = jnp.clip((dst + 0.5) * scale - 0.5, 0.0, float(in_size - 1))
    i0 = jnp.floor(src).astype(jnp.int32)
    i1 = jnp.minimum(i0 + 1, in_size - 1)
    w1 = src - i0.astype(jnp.float32)
    w0 = 1.0 - w1
    return (jax.nn.one_hot(i0, in_size, dtype=jnp.float32) * w0[:, None]
            + jax.nn.one_hot(i1, in_size, dtype=jnp.float32) * w1[:, None])


def _arp_output_size(h, w, target_size):
    """torchvision F.resize(img, int): shorter edge -> target_size (ARP)."""
    if w <= h:
        return int(target_size * h / w), target_size
    return target_size, int(target_size * w / h)


@functools.lru_cache(maxsize=256)
def _build_resize_fn(n, c, h_in, w_in, h_out, w_out, dtype_name):
    """Cached, jitted resize callable for one static (shape, dtype, target)."""
    in_dtype = jnp.dtype(dtype_name)
    is_int = jnp.issubdtype(in_dtype, jnp.integer)
    if is_int:
        cdtype = jnp.float32            # no int MXU path; keep rounding accurate
    elif in_dtype in (jnp.float32, jnp.bfloat16):
        cdtype = jnp.bfloat16           # bf16 operands, f32 accumulation
    else:
        cdtype = jnp.float32

    wp = _round_up(w_out, 128)          # lane-dense (unmasked) output stores
    wy = _bilinear_matrix(h_in, h_out).astype(cdtype)               # (H_out, H_in)
    wxt = _bilinear_matrix(w_in, w_out).T                           # (W_in, W_out)
    wxt = jnp.pad(wxt, ((0, 0), (0, wp - w_out))).astype(cdtype)    # (W_in, Wp)

    cbytes = jnp.dtype(cdtype).itemsize
    block_b = _choose_block_b(n * c, h_in, w_in, h_out, wp, cbytes, 4)

    def fn(img):
        x = img.astype(cdtype).reshape(n * c, h_in, w_in)
        res = _resize_planes(x, wy, wxt, block_b)          # (NC, H_out, Wp) f32
        res = res[:, :, :w_out].reshape(n, c, h_out, w_out)
        if is_int:
            info = jnp.iinfo(in_dtype)
            res = jnp.clip(jnp.round(res), info.min, info.max)
        return res.astype(in_dtype)

    return jax.jit(fn)


# ---------------------------------------------------------------------------
# Module-equivalent wrapper
# ---------------------------------------------------------------------------
class PairedRandomARPResize:
    """Pair version of aspect-ratio-preserving random resize (bilinear).

    Random target size drawn host-side (like the original torch module's
    random.randint) so output shapes stay static and there is no device sync.
    """
    # TODO(synk): torchvision's antialias=True bilinear downscale path is not
    # implemented; this matches interpolate(bilinear, align_corners=False,
    # antialias=False), i.e. the module's antialias=None/False behaviour.

    def __init__(self, size_range, antialias=None, seed=None):
        if not (isinstance(size_range, (tuple, list)) and len(size_range) == 2):
            raise TypeError(
                f"size_range should be sequence with 2 int. Got {size_range}")
        self.size_range = size_range
        self.antialias = antialias
        self._rng = random.Random(seed)

    def _resize_one(self, img, target_size):
        n, c, h, w = img.shape
        oh, ow = _arp_output_size(h, w, target_size)
        fn = _build_resize_fn(n, c, h, w, oh, ow, jnp.dtype(img.dtype).name)
        return fn(img)

    def __call__(self, imgs):
        min_size, max_size = sorted(self.size_range)
        target_size = self._rng.randint(min_size, max_size)   # host RNG, no sync
        if isinstance(imgs, (tuple, list)) and len(imgs) >= 2:
            return [self._resize_one(im, target_size) for im in imgs]
        return self._resize_one(imgs, target_size)


# ---------------------------------------------------------------------------
# Pure-JAX reference (matched precision policy) for the sanity check
# ---------------------------------------------------------------------------
def _ref_resize(img, h_out, w_out, cdtype):
    n, c, h_in, w_in = img.shape
    wy = _bilinear_matrix(h_in, h_out).astype(cdtype)
    wxt = _bilinear_matrix(w_in, w_out).T.astype(cdtype)
    x = img.astype(cdtype)
    t = jnp.einsum("nchw,wp->nchp", x, wxt,
                   preferred_element_type=jnp.float32).astype(cdtype)
    out = jnp.einsum("oh,nchp->ncop", wy, t,
                     preferred_element_type=jnp.float32)
    return out.astype(jnp.float32)


if __name__ == "__main__":
    key = jax.random.PRNGKey(0)
    k_a, k_b = jax.random.split(key)

    # Pair of images (NCHW), second has a different aspect ratio.
    img_a = jax.random.uniform(k_a, (2, 4, 16, 16), dtype=jnp.float32)
    img_b = jax.random.uniform(k_b, (2, 4, 16, 24), dtype=jnp.float32)

    resize_op = PairedRandomARPResize(size_range=(8, 12), seed=0)
    out_a, out_b = resize_op([img_a, img_b])
    jax.block_until_ready(out_a)
    jax.block_until_ready(out_b)

    # Same host RNG sequence -> same target size for the reference check.
    target_size = random.Random(0).randint(8, 12)
    for img, out in ((img_a, out_a), (img_b, out_b)):
        n, c, h, w = img.shape
        oh, ow = _arp_output_size(h, w, target_size)
        assert out.shape == (n, c, oh, ow), out.shape
        assert out.dtype == img.dtype, out.dtype
        ref = _ref_resize(img, oh, ow, jnp.bfloat16)
        err = float(jnp.max(jnp.abs(out.astype(jnp.float32) - ref)))
        assert jnp.allclose(out.astype(jnp.float32), ref,
                            atol=2e-3, rtol=2e-3), f"mismatch vs reference: {err}"

    print("KERNEL_OK")
</pallas_src>

<mosaic_0001>
module attributes {stable_mosaic.version = 11 : i64} {
  func.func @_resize_block_kernel(%arg0: i32, %arg1: memref<4x16x16xbf16, #tpu.memory_space<vmem>>, %arg2: memref<11x16xbf16, #tpu.memory_space<vmem>>, %arg3: memref<16x128xbf16, #tpu.memory_space<vmem>>, %arg4: memref<4x11x128xf32, #tpu.memory_space<vmem>>) attributes {dimension_semantics = [#tpu.dimension_semantics<parallel>], iteration_bounds = array<i64: 2>, scalar_prefetch = 0 : i64, scratch_operands = 0 : i64, tpu.core_type = #tpu.core_type<tc>, window_params = [{transform_indices = @transform_0, window_bounds = array<i64: 4, 16, 16>}, {pipeline_mode = #tpu.pipeline_mode<synchronous>, transform_indices = @transform_1, window_bounds = array<i64: 11, 16>}, {pipeline_mode = #tpu.pipeline_mode<synchronous>, transform_indices = @transform_2, window_bounds = array<i64: 16, 128>}, {transform_indices = @transform_3, window_bounds = array<i64: 4, 11, 128>}]} {
    %c0 = arith.constant 0 : index
    %c0_0 = arith.constant 0 : index
    %c0_1 = arith.constant 0 : index
    %0 = vector.load %arg1[%c0, %c0_0, %c0_1] : memref<4x16x16xbf16, #tpu.memory_space<vmem>>, vector<4x16x16xbf16>
    %c0_2 = arith.constant 0 : index
    %c0_3 = arith.constant 0 : index
    %1 = vector.load %arg3[%c0_2, %c0_3] : memref<16x128xbf16, #tpu.memory_space<vmem>>, vector<16x128xbf16>
    %c0_4 = arith.constant 0 : index
    %c0_5 = arith.constant 0 : index
    %2 = vector.load %arg2[%c0_4, %c0_5] : memref<11x16xbf16, #tpu.memory_space<vmem>>, vector<11x16xbf16>
    %3 = vector.shape_cast %0 : vector<4x16x16xbf16> to vector<64x16xbf16>
    %cst = arith.constant dense<0.000000e+00> : vector<64x128xf32>
    %4 = tpu.matmul %3, %1, %cst {dimension_numbers = #tpu.dot_dimension_numbers<[1], [0], [0], [1], [0, 0, 1, 1], [], []>} : vector<64x16xbf16>, vector<16x128xbf16>, vector<64x128xf32> -> vector<64x128xf32>
    %5 = arith.truncf %4 : vector<64x128xf32> to vector<64x128xbf16>
    %6 = vector.shape_cast %5 : vector<64x128xbf16> to vector<4x16x128xbf16>
    %7 = vector.extract_strided_slice %6 {offsets = [0, 0, 0], sizes = [1, 16, 128], strides = [1, 1, 1]} : vector<4x16x128xbf16> to vector<1x16x128xbf16>
    %8 = vector.shape_cast %7 : vector<1x16x128xbf16> to vector<16x128xbf16>
    %cst_6 = arith.constant dense<0.000000e+00> : vector<11x128xf32>
    %9 = tpu.matmul %2, %8, %cst_6 {dimension_numbers = #tpu.dot_dimension_numbers<[1], [0], [0], [1], [0, 0, 1, 1], [], []>} : vector<11x16xbf16>, vector<16x128xbf16>, vector<11x128xf32> -> vector<11x128xf32>
    %c0_7 = arith.constant 0 : index
    %c0_8 = arith.constant 0 : index
    %c0_9 = arith.constant 0 : index
    %10 = vector.load %arg4[%c0_7, %c0_8, %c0_9] : memref<4x11x128xf32, #tpu.memory_space<vmem>>, vector<1x11x128xf32>
    %11 = vector.shape_cast %10 : vector<1x11x128xf32> to vector<11x128xf32>
    %12 = vector.shape_cast %9 : vector<11x128xf32> to vector<1x11x128xf32>
    tpu.vector_store %arg4[%c0_7, %c0_8, %c0_9], %12 {strides = array<i32>} : memref<4x11x128xf32, #tpu.memory_space<vmem>>, vector<1x11x128xf32>,
    %13 = vector.extract_strided_slice %6 {offsets = [1, 0, 0], sizes = [1, 16, 128], strides = [1, 1, 1]} : vector<4x16x128xbf16> to vector<1x16x128xbf16>
    %14 = vector.shape_cast %13 : vector<1x16x128xbf16> to vector<16x128xbf16>
    %cst_10 = arith.constant dense<0.000000e+00> : vector<11x128xf32>
    %15 = tpu.matmul %2, %14, %cst_10 {dimension_numbers = #tpu.dot_dimension_numbers<[1], [0], [0], [1], [0, 0, 1, 1], [], []>} : vector<11x16xbf16>, vector<16x128xbf16>, vector<11x128xf32> -> vector<11x128xf32>
    %c1 = arith.constant 1 : index
    %c0_11 = arith.constant 0 : index
    %c0_12 = arith.constant 0 : index
    %16 = vector.load %arg4[%c1, %c0_11, %c0_12] : memref<4x11x128xf32, #tpu.memory_space<vmem>>, vector<1x11x128xf32>
    %17 = vector.shape_cast %16 : vector<1x11x128xf32> to vector<11x128xf32>
    %18 = vector.shape_cast %15 : vector<11x128xf32> to vector<1x11x128xf32>
    tpu.vector_store %arg4[%c1, %c0_11, %c0_12], %18 {strides = array<i32>} : memref<4x11x128xf32, #tpu.memory_space<vmem>>, vector<1x11x128xf32>,
    %19 = vector.extract_strided_slice %6 {offsets = [2, 0, 0], sizes = [1, 16, 128], strides = [1, 1, 1]} : vector<4x16x128xbf16> to vector<1x16x128xbf16>
    %20 = vector.shape_cast %19 : vector<1x16x128xbf16> to vector<16x128xbf16>
    %cst_13 = arith.constant dense<0.000000e+00> : vector<11x128xf32>
    %21 = tpu.matmul %2, %20, %cst_13 {dimension_numbers = #tpu.dot_dimension_numbers<[1], [0], [0], [1], [0, 0, 1, 1], [], []>} : vector<11x16xbf16>, vector<16x128xbf16>, vector<11x128xf32> -> vector<11x128xf32>
    %c2 = arith.constant 2 : index
    %c0_14 = arith.constant 0 : index
    %c0_15 = arith.constant 0 : index
    %22 = vector.load %arg4[%c2, %c0_14, %c0_15] : memref<4x11x128xf32, #tpu.memory_space<vmem>>, vector<1x11x128xf32>
    %23 = vector.shape_cast %22 : vector<1x11x128xf32> to vector<11x128xf32>
    %24 = vector.shape_cast %21 : vector<11x128xf32> to vector<1x11x128xf32>
    tpu.vector_store %arg4[%c2, %c0_14, %c0_15], %24 {strides = array<i32>} : memref<4x11x128xf32, #tpu.memory_space<vmem>>, vector<1x11x128xf32>,
    %25 = vector.extract_strided_slice %6 {offsets = [3, 0, 0], sizes = [1, 16, 128], strides = [1, 1, 1]} : vector<4x16x128xbf16> to vector<1x16x128xbf16>
    %26 = vector.shape_cast %25 : vector<1x16x128xbf16> to vector<16x128xbf16>
    %cst_16 = arith.constant dense<0.000000e+00> : vector<11x128xf32>
    %27 = tpu.matmul %2, %26, %cst_16 {dimension_numbers = #tpu.dot_dimension_numbers<[1], [0], [0], [1], [0, 0, 1, 1], [], []>} : vector<11x16xbf16>, vector<16x128xbf16>, vector<11x128xf32> -> vector<11x128xf32>
    %c3 = arith.constant 3 : index
    %c0_17 = arith.constant 0 : index
    %c0_18 = arith.constant 0 : index
    %28 = vector.load %arg4[%c3, %c0_17, %c0_18] : memref<4x11x128xf32, #tpu.memory_space<vmem>>, vector<1x11x128xf32>
    %29 = vector.shape_cast %28 : vector<1x11x128xf32> to vector<11x128xf32>
    %30 = vector.shape_cast %27 : vector<11x128xf32> to vector<1x11x128xf32>
    tpu.vector_store %arg4[%c3, %c0_17, %c0_18], %30 {strides = array<i32>} : memref<4x11x128xf32, #tpu.memory_space<vmem>>, vector<1x11x128xf32>,
    return
  }
  func.func @transform_0(%arg0: i32) -> (i32, i32, i32) {
    %c0_i32 = arith.constant 0 : i32
    %c0_i32_0 = arith.constant 0 : i32
    %c0_i32_1 = arith.constant 0 : i32
    return %arg0, %c0_i32, %c0_i32_0 : i32, i32, i32
  }
  func.func @transform_1(%arg0: i32) -> (i32, i32) {
    %c0_i32 = arith.constant 0 : i32
    %c0_i32_0 = arith.constant 0 : i32
    %c0_i32_1 = arith.constant 0 : i32
    return %c0_i32, %c0_i32_0 : i32, i32
  }
  func.func @transform_2(%arg0: i32) -> (i32, i32) {
    %c0_i32 = arith.constant 0 : i32
    %c0_i32_0 = arith.constant 0 : i32
    %c0_i32_1 = arith.constant 0 : i32
    return %c0_i32, %c0_i32_0 : i32, i32
  }
  func.func @transform_3(%arg0: i32) -> (i32, i32, i32) {
    %c0_i32 = arith.constant 0 : i32
    %c0_i32_0 = arith.constant 0 : i32
    %c0_i32_1 = arith.constant 0 : i32
    return %arg0, %c0_i32, %c0_i32_0 : i32, i32, i32
  }
}

</mosaic_0001>

<llo_original>
// kernel: fn.1
$region0: #{fn.1}
  #allocation0 [shape = 'u32[]', space=smem, size = 0x4, offset = 0x4, fixed_abs, tag = 'smem constant byte address 0x4 - core index']
  #allocation1 [shape = 'u32[144,128]{1,0:T(1,128)}', space=vmem, size = 0x12000, scoped, tag = 'internal scratch']
  %s0 = inlined_call_operand.vmem [shape: bf16[8,16,16], index: 0, kind: input, shape index: {}]
  %s1 = inlined_call_operand.vmem [shape: bf16[11,16], index: 1, kind: input, shape index: {}]
  %s2 = inlined_call_operand.vmem [shape: bf16[16,128], index: 2, kind: input, shape index: {}]
  %s3 = inlined_call_operand.vmem [shape: f32[8,11,128], index: 3, kind: output, shape index: {}]
  %s4 = sld [smem:[#allocation0]]
  $region45: #{fn.1} parent=0
    _
  %s6 = ssub.s32 1, %s4
  %s7 = scalar_select 0, %s6, %s4
  loop: start=0, step=1, limit=4
  $region2: #{fn.1} parent=0 // loop_pre_header
    _
  $region3: #{fn.1} parent=0 // loop_header
    %s9 = sphi 0, %s13
    %p10 = scmp.ge.s32.totalorder %s9, 4
    %s19 = sphi 0, %s21
    %s22 = sphi 0, %s19
    %s23 = sphi 0, %s22
    %s39 = sphi 0, %s23
    %s43 = sphi 0, %s43
    %s45 = sphi 0, %s43
    %s46 = sphi 0, %s45
    %s60 = sphi 0, %s46
    %s64 = sphi 0, %s64
    %s66 = sphi 0, %s64
    %s67 = sphi 0, %s66
    %s81 = sphi 0, %s67
    %s87 = sphi 0, %s89
    %s90 = sphi 0, %s87
    %s91 = sphi 0, %s90
    %s107 = sphi 0, %s91
  $region4: #{fn.1} parent=0 // loop_header_branch
    %12 = sbr.rel (%p10) target = $region8
  $region5: #{fn.1} parent=0 // loop_body
    %s14 = ssub.s32 %s9, 1
    %s15 = ssub.s32 %s9, 2
    %s16 = sadd.s32 %s9, 1
    %s17 = ssub.s32 %s9, %s16
    %p18 = scmp.eq.s32.totalorder %s17, 0
    %s20 = sadd.s32 %s19, 1
    %s21 = scalar_select %p18, %s19, %s20
    %p24 = pneg %p18
    %p25 = scmp.eq.s32.totalorder %s9, 1
    %p26 = por %p24, %p25
    %p27 = scmp.ne.s32.totalorder %s19, %s22
    %p28 = scmp.eq.s32.totalorder %s9, 0
    %p29 = por %p27, %p28
    %p30 = scmp.ne.s32.totalorder %s19, %s22
    %p31 = scmp.eq.s32.totalorder %s14, 1
    %p32 = por %p30, %p31
    %p33 = scmp.ne.s32.totalorder %s22, %s23
    %p34 = scmp.eq.s32.totalorder %s14, 0
    %p35 = por %p33, %p34
    %p36 = scmp.ne.s32.totalorder %s22, %s23
    %p37 = scmp.eq.s32.totalorder %s15, 1
    %p38 = por %p36, %p37
    %p40 = scmp.ne.s32.totalorder %s23, %s39
    %p41 = scmp.eq.s32.totalorder %s15, 0
    %p42 = por %p40, %p41
    %s44 = sadd.s32 %s43, 1
    %p47 = scmp.eq.s32.totalorder %s9, 1
    %p48 = scmp.ne.s32.totalorder %s43, %s45
    %p49 = scmp.eq.s32.totalorder %s9, 0
    %p50 = por %p48, %p49
    %p51 = scmp.ne.s32.totalorder %s43, %s45
    %p52 = scmp.eq.s32.totalorder %s14, 1
    %p53 = por %p51, %p52
    %p54 = scmp.ne.s32.totalorder %s45, %s46
    %p55 = scmp.eq.s32.totalorder %s14, 0
    %p56 = por %p54, %p55
    %p57 = scmp.ne.s32.totalorder %s45, %s46
    %p58 = scmp.eq.s32.totalorder %s15, 1
    %p59 = por %p57, %p58
    %p61 = scmp.ne.s32.totalorder %s46, %s60
    %p62 = scmp.eq.s32.totalorder %s15, 0
    %p63 = por %p61, %p62
    %s65 = sadd.s32 %s64, 1
    %p68 = scmp.eq.s32.totalorder %s9, 1
    %p69 = scmp.ne.s32.totalorder %s64, %s66
    %p70 = scmp.eq.s32.totalorder %s9, 0
    %p71 = por %p69, %p70
    %p72 = scmp.ne.s32.totalorder %s64, %s66
    %p73 = scmp.eq.s32.totalorder %s14, 1
    %p74 = por %p72, %p73
    %p75 = scmp.ne.s32.totalorder %s66, %s67
    %p76 = scmp.eq.s32.totalorder %s14, 0
    %p77 = por %p75, %p76
    %p78 = scmp.ne.s32.totalorder %s66, %s67
    %p79 = scmp.eq.s32.totalorder %s15, 1
    %p80 = por %p78, %p79
    %p82 = scmp.ne.s32.totalorder %s67, %s81
    %p83 = scmp.eq.s32.totalorder %s15, 0
    %p84 = por %p82, %p83
    %s85 = ssub.s32 %s9, %s16
    %p86 = scmp.eq.s32.totalorder %s85, 0
    %s88 = sadd.s32 %s87, 1
    %s89 = scalar_select %p86, %s87, %s88
    %p92 = pneg %p86
    %p93 = scmp.eq.s32.totalorder %s9, 1
    %p94 = por %p92, %p93
    %p95 = scmp.ne.s32.totalorder %s87, %s90
    %p96 = scmp.eq.s32.totalorder %s9, 0
    %p97 = por %p95, %p96
    %p98 = scmp.ne.s32.totalorder %s87, %s90
    %p99 = scmp.eq.s32.totalorder %s14, 1
    %p100 = por %p98, %p99
    %p101 = scmp.ne.s32.totalorder %s90, %s91
    %p102 = scmp.eq.s32.totalorder %s14, 0
    %p103 = por %p101, %p102
    %p104 = scmp.ne.s32.totalorder %s90, %s91
    %p105 = scmp.eq.s32.totalorder %s15, 1
    %p106 = por %p104, %p105
    %p108 = scmp.ne.s32.totalorder %s91, %s107
    %p109 = scmp.eq.s32.totalorder %s15, 0
    %p110 = por %p108, %p109
    %p111 = scmp.le.s32.totalorder 1, %s9
    %p112 = scmp.lt.s32.totalorder %s9, 3
    %p113 = pnand %p111, %p112
    %p114 = pneg %p113
    // Predicated region
    $region9: #{fn.1} parent=5 // pred_check
      _
    $region10: #{fn.1} parent=5 // pred_check_branch
      %116 = sbr.rel (%p113) target = $region12
    $region11: #{fn.1} parent=5 // pred_region
      %s117 = ssub.s32 %s9, 1
      // Predicated region
      $region13: #{fn.1} parent=11 // pred_check
        %p118 = pneg %p56
      $region14: #{fn.1} parent=11 // pred_check_branch
        %120 = sbr.rel (%p118) target = $region16
      $region15: #{fn.1} parent=11 // pred_region
        _
      $region16: #{fn.1} parent=11 // pred_fallthru
        _
      // Predicated region
      $region17: #{fn.1} parent=11 // pred_check
        %p121 = pneg %p77
      $region18: #{fn.1} parent=11 // pred_check_branch
        %123 = sbr.rel (%p121) target = $region20
      $region19: #{fn.1} parent=11 // pred_region
        _
      $region20: #{fn.1} parent=11 // pred_fallthru
        _
    $region12: #{fn.1} parent=5 // pred_fallthru
      _
    %p124 = scmp.lt.s32.totalorder %s9, 2
    // Predicated region
    $region21: #{fn.1} parent=5 // pred_check
      %p125 = pneg %p124
    $region22: #{fn.1} parent=5 // pred_check_branch
      %127 = sbr.rel (%p125) target = $region24
    $region23: #{fn.1} parent=5 // pred_region
      // Predicated region
      $region25: #{fn.1} parent=23 // pred_check
        %p128 = pneg %p29
      $region26: #{fn.1} parent=23 // pred_check_branch
        %130 = sbr.rel (%p128) target = $region28
      $region27: #{fn.1} parent=23 // pred_region
        %s131 = smul.u32 4, %s9
        %p132 = scmp.lt.s32.totalorder %s131, 7
        %s133 = scalar_select %p132, %s131, 7
        %s134 = smul.addr %s133, 2
        %s135 = smul.addr %s134, 4
        %s136 = scalar_lea.vmem %s0, %s135
        %s137 = smul.u32 4, %s9
      $region28: #{fn.1} parent=23 // pred_fallthru
        _
    $region24: #{fn.1} parent=5 // pred_fallthru
      _
    %p138 = scmp.le.s32.totalorder 1, %s9
    %p139 = scmp.lt.s32.totalorder %s9, 3
    %p140 = pnand %p138, %p139
    %p141 = pneg %p140
    // Predicated region
    $region29: #{fn.1} parent=5 // pred_check
      _
    $region30: #{fn.1} parent=5 // pred_check_branch
      %143 = sbr.rel (%p140) target = $region32
    $region31: #{fn.1} parent=5 // pred_region
      %s144 = ssub.s32 %s9, 1
      %s145 = smul.u32 4, %s14
      %p146 = scmp.lt.s32.totalorder %s145, 7
      %s147 = scalar_select %p146, %s145, 7
      %s148 = smul.addr %s147, 2
      %s149 = smul.addr %s148, 4
      %s150 = scalar_lea.vmem %s0, %s149
      %p151 = pneg %p35
      %p152 = pneg %p32
      %p153 = pneg %p56
      %p154 = pneg %p53
      %p155 = pneg %p77
      %p156 = pneg %p74
      %p157 = pneg %p103
      %p158 = pneg %p100
      %s159 = smul.u32 4, %s14
      %p160 = scmp.lt.s32.totalorder %s159, 7
      %s161 = scalar_select %p160, %s159, 7
      %s162 = smul.addr %s161, 2
      %s163 = smul.addr %s162, 8
      %s164 = scalar_lea.vmem %s3, %s163
      %s165 = smul.u32 4, %s14
      %p166 = scmp.lt.s32.totalorder %s165, 7
      %s167 = scalar_select %p166, %s165, 7
      %s168 = smul.addr %s167, 2
      %s169 = smul.addr %s168, 4
      %s170 = scalar_lea.vmem %s0, %s169
      %s171 = smul.u32 4, %s14
      %s172 = smul.u32 4, %s14
      %p173 = scmp.lt.s32.totalorder %s172, 7
      %s174 = scalar_select %p173, %s172, 7
      %s175 = smul.addr %s174, 2
      %s176 = smul.addr %s175, 8
      %s177 = scalar_lea.vmem %s3, %s176
      %s178 = smul.u32 4, %s14
      %v180 = vld [vmem:[%s170] sm:$0xf]
      %v181 = vld [vmem:[%s170 + $0x4] sm:$0xf]
      %v182 = vld [vmem:[%s170 + $0x8] sm:$0xf]
      %v183 = vld [vmem:[%s170 + $0xc] sm:$0xf]
      %v184 = vld [vmem:[%s170 + $0x10] sm:$0xf]
      %v185 = vld [vmem:[%s170 + $0x14] sm:$0xf]
      %v186 = vld [vmem:[%s170 + $0x18] sm:$0xf]
      %v187 = vld [vmem:[%s170 + $0x1c] sm:$0xf]
      %v188 = vld [vmem:[%s2] sm:$0xf]
      %v189 = vld [vmem:[%s2 + $0x4] sm:$0xf]
      %v190 = vld [vmem:[%s1] sm:$0xf]
      %v191 = vld [vmem:[%s1 + $0x4] sm:$0x3]
      %v200 = vunpack.c.l.b16 %v180
      %v201 = vunpack.c.l.b16 %v181
      %v202 = vunpack.c.l.b16 %v182
      %v203 = vunpack.c.l.b16 %v183
      %v204 = vunpack.c.l.b16 %v184
      %v205 = vunpack.c.l.b16 %v185
      %v206 = vunpack.c.l.b16 %v186
      %v207 = vunpack.c.l.b16 %v187
      %v208 = vpack.c.b16 %v201, %v200
      %v209 = vpack.c.b16 %v203, %v202
      %v210 = vpack.c.b16 %v205, %v204
      %v211 = vpack.c.b16 %v207, %v206
      %v214 = vunpack.c.l.b16 %v188
      %v215 = vunpack.c.l.b16 %v189
      %v216 = vpack.c.b16 %v215, %v214
      %vm218 = vcmask 130048
      %v220 = vsel %vm218, %v208, 0
      %v223 = vsel %vm218, %v209, 0
      %v226 = vsel %vm218, %v210, 0
      %v229 = vsel %vm218, %v211, 0
      %231 = vmatprep.subr.bf16.mxu0 0
      %232 = vmatpush1.bf16.msra.mxu0 %v216
      %233 = vmatprep.subr.bf16.mxu0 0
      %234 = vmatpush1.bf16.msra.mxu0 0
      %235 = vmatprep.subr.bf16.mxu0 0
      %236 = vmatpush1.bf16.msra.mxu0 0
      %237 = vmatprep.subr.bf16.mxu0 0
      %238 = vmatpush1.bf16.msra.mxu0 0
      %239 = vmatprep.subr.bf16.mxu0 0
      %240 = vmatpush1.bf16.msra.mxu0 0
      %241 = vmatprep.subr.bf16.mxu0 0
      %242 = vmatpush1.bf16.msra.mxu0 0
      %243 = vmatprep.subr.bf16.mxu0 0
      %244 = vmatpush1.bf16.msra.mxu0 0
      %245 = vmatprep.subr.bf16.mxu0 0
      %246 = vmatpush1.bf16.msra.mxu0 0
      %247 = vmatprep.subr.bf16.mxu0 0
      %248 = vmatpush1.bf16.msra.mxu0 0
      %249 = vmatprep.subr.bf16.mxu0 0
      %250 = vmatpush1.bf16.msra.mxu0 0
      %251 = vmatprep.subr.bf16.mxu0 0
      %252 = vmatpush1.bf16.msra.mxu0 0
      %253 = vmatprep.subr.bf16.mxu0 0
      %254 = vmatpush1.bf16.msra.mxu0 0
      %255 = vmatprep.subr.bf16.mxu0 0
      %256 = vmatpush1.bf16.msra.mxu0 0
      %257 = vmatprep.subr.bf16.mxu0 0
      %258 = vmatpush1.bf16.msra.mxu0 0
      %259 = vmatprep.subr.bf16.mxu0 0
      %260 = vmatpush1.bf16.msra.mxu0 0
      %261 = vmatprep.subr.bf16.mxu0 0
      %262 = vmatpush1.bf16.msra.mxu0 0
      %263 = vmatprep.mubr.bf16.mxu0 0
      %264 = vmatmul.mubr.bf16.gmra.mrb[0].mxu0 %v220
      %v265 = vpop.f32.mrb[0].mxu0
      %v266 = vadd.f32 0.0, %v265
      %v267 = vpop.f32.mrb[0].mxu0
      %v268 = vpop.f32.mrb[0].mxu0
      %v269 = vadd.f32 0.0, %v268
      %v270 = vpop.f32.mrb[0].mxu0
      %271 = vmatprep.mubr.bf16.mxu0 0
      %272 = vmatmul.mubr.bf16.gmra.mrb[0].mxu0 %v223
      %v273 = vpop.f32.mrb[0].mxu0
      %v274 = vadd.f32 0.0, %v273
      %v275 = vpop.f32.mrb[0].mxu0
      %v276 = vpop.f32.mrb[0].mxu0
      %v277 = vadd.f32 0.0, %v276
      %v278 = vpop.f32.mrb[0].mxu0
      %279 = vmatprep.mubr.bf16.mxu0 0
      %280 = vmatmul.mubr.bf16.gmra.mrb[0].mxu0 %v226
      %v281 = vpop.f32.mrb[0].mxu0
      %v282 = vadd.f32 0.0, %v281
      %v283 = vpop.f32.mrb[0].mxu0
      %v284 = vpop.f32.mrb[0].mxu0
      %v285 = vadd.f32 0.0, %v284
      %v286 = vpop.f32.mrb[0].mxu0
      %287 = vmatprep.mubr.bf16.mxu0 0
      %288 = vmatmul.mubr.bf16.gmra.mrb[0].mxu0 %v229
      %v289 = vpop.f32.mrb[0].mxu0
      %v290 = vadd.f32 0.0, %v289
      %v291 = vpop.f32.mrb[0].mxu0
      %v292 = vpop.f32.mrb[0].mxu0
      %v293 = vadd.f32 0.0, %v292
      %v294 = vpop.f32.mrb[0].mxu0
      %295 = vdwg.mxu0
      %v296 = vpack.c.bf16 %v269, %v266
      %v297 = vpack.c.bf16 %v277, %v274
      %v298 = vpack.c.bf16 %v285, %v282
      %v299 = vpack.c.bf16 %v293, %v290
      %v302 = vunpack.c.l.b16 %v190
      %v303 = vunpack.c.l.b16 %v191
      %v304 = vpack.c.b16 %v303, %v302
      %v306 = vsel %vm218, %v304, 0
      %308 = vmatprep.subr.bf16.mxu0 0
      %309 = vmatpush1.bf16.msra.mxu0 %v296
      %310 = vmatprep.subr.bf16.mxu0 0
      %311 = vmatpush1.bf16.msra.mxu0 0
      %312 = vmatprep.subr.bf16.mxu0 0
      %313 = vmatpush1.bf16.msra.mxu0 0
      %314 = vmatprep.subr.bf16.mxu0 0
      %315 = vmatpush1.bf16.msra.mxu0 0
      %316 = vmatprep.subr.bf16.mxu0 0
      %317 = vmatpush1.bf16.msra.mxu0 0
      %318 = vmatprep.subr.bf16.mxu0 0
      %319 = vmatpush1.bf16.msra.mxu0 0
      %320 = vmatprep.subr.bf16.mxu0 0
      %321 = vmatpush1.bf16.msra.mxu0 0
      %322 = vmatprep.subr.bf16.mxu0 0
      %323 = vmatpush1.bf16.msra.mxu0 0
      %324 = vmatprep.subr.bf16.mxu0 0
      %325 = vmatpush1.bf16.msra.mxu0 0
      %326 = vmatprep.subr.bf16.mxu0 0
      %327 = vmatpush1.bf16.msra.mxu0 0
      %328 = vmatprep.subr.bf16.mxu0 0
      %329 = vmatpush1.bf16.msra.mxu0 0
      %330 = vmatprep.subr.bf16.mxu0 0
      %331 = vmatpush1.bf16.msra.mxu0 0
      %332 = vmatprep.subr.bf16.mxu0 0
      %333 = vmatpush1.bf16.msra.mxu0 0
      %334 = vmatprep.subr.bf16.mxu0 0
      %335 = vmatpush1.bf16.msra.mxu0 0
      %336 = vmatprep.subr.bf16.mxu0 0
      %337 = vmatpush1.bf16.msra.mxu0 0
      %338 = vmatprep.subr.bf16.mxu0 0
      %339 = vmatpush1.bf16.msra.mxu0 0
      %340 = vmatprep.mubr.bf16.mxu0 0
      %341 = vmatmul.mubr.bf16.gmra.mrb[0].mxu0 %v306
      %v342 = vpop.f32.mrb[0].mxu0
      %v343 = vadd.f32 0.0, %v342
      %v344 = vpop.f32.mrb[0].mxu0
      %v345 = vpop.f32.mrb[0].mxu0
      %v346 = vadd.f32 0.0, %v345
      %v347 = vpop.f32.mrb[0].mxu0
      %348 = vdwg.mxu0
      %349 = vst [vmem:[%s177] sm:$0xff] %v343
      %350 = vst [vmem:[%s177 + $0x8] sm:$0x7] %v346
      %351 = vmatprep.subr.bf16.mxu0 0
      %352 = vmatpush1.bf16.msra.mxu0 %v297
      %353 = vmatprep.subr.bf16.mxu0 0
      %354 = vmatpush1.bf16.msra.mxu0 0
      %355 = vmatprep.subr.bf16.mxu0 0
      %356 = vmatpush1.bf16.msra.mxu0 0
      %357 = vmatprep.subr.bf16.mxu0 0
      %358 = vmatpush1.bf16.msra.mxu0 0
      %359 = vmatprep.subr.bf16.mxu0 0
      %360 = vmatpush1.bf16.msra.mxu0 0
      %361 = vmatprep.subr.bf16.mxu0 0
      %362 = vmatpush1.bf16.msra.mxu0 0
      %363 = vmatprep.subr.bf16.mxu0 0
      %364 = vmatpush1.bf16.msra.mxu0 0
      %365 = vmatprep.subr.bf16.mxu0 0
      %366 = vmatpush1.bf16.msra.mxu0 0
      %367 = vmatprep.subr.bf16.mxu0 0
      %368 = vmatpush1.bf16.msra.mxu0 0
      %369 = vmatprep.subr.bf16.mxu0 0
      %370 = vmatpush1.bf16.msra.mxu0 0
      %371 = vmatprep.subr.bf16.mxu0 0
      %372 = vmatpush1.bf16.msra.mxu0 0
      %373 = vmatprep.subr.bf16.mxu0 0
      %374 = vmatpush1.bf16.msra.mxu0 0
      %375 = vmatprep.subr.bf16.mxu0 0
      %376 = vmatpush1.bf16.msra.mxu0 0
      %377 = vmatprep.subr.bf16.mxu0 0
      %378 = vmatpush1.bf16.msra.mxu0 0
      %379 = vmatprep.subr.bf16.mxu0 0
      %380 = vmatpush1.bf16.msra.mxu0 0
      %381 = vmatprep.subr.bf16.mxu0 0
      %382 = vmatpush1.bf16.msra.mxu0 0
      %383 = vmatprep.mubr.bf16.mxu0 0
      %384 = vmatmul.mubr.bf16.gmra.mrb[0].mxu0 %v306
      %v385 = vpop.f32.mrb[0].mxu0
      %v386 = vadd.f32 0.0, %v385
      %v387 = vpop.f32.mrb[0].mxu0
      %v388 = vpop.f32.mrb[0].mxu0
      %v389 = vadd.f32 0.0, %v388
      %v390 = vpop.f32.mrb[0].mxu0
      %391 = vdwg.mxu0
      %s392 = scalar_lea.vmem %s177, 16
      %393 = vst [vmem:[%s392] sm:$0xff] %v386
      %394 = vst [vmem:[%s392 + $0x8] sm:$0x7] %v389
      %395 = vmatprep.subr.bf16.mxu0 0
      %396 = vmatpush1.bf16.msra.mxu0 %v298
      %397 = vmatprep.subr.bf16.mxu0 0
      %398 = vmatpush1.bf16.msra.mxu0 0
      %399 = vmatprep.subr.bf16.mxu0 0
      %400 = vmatpush1.bf16.msra.mxu0 0
      %401 = vmatprep.subr.bf16.mxu0 0
      %402 = vmatpush1.bf16.msra.mxu0 0
      %403 = vmatprep.subr.bf16.mxu0 0
      %404 = vmatpush1.bf16.msra.mxu0 0
      %405 = vmatprep.subr.bf16.mxu0 0
      %406 = vmatpush1.bf16.msra.mxu0 0
      %407 = vmatprep.subr.bf16.mxu0 0
      %408 = vmatpush1.bf16.msra.mxu0 0
      %409 = vmatprep.subr.bf16.mxu0 0
      %410 = vmatpush1.bf16.msra.mxu0 0
      %411 = vmatprep.subr.bf16.mxu0 0
      %412 = vmatpush1.bf16.msra.mxu0 0
      %413 = vmatprep.subr.bf16.mxu0 0
      %414 = vmatpush1.bf16.msra.mxu0 0
      %415 = vmatprep.subr.bf16.mxu0 0
      %416 = vmatpush1.bf16.msra.mxu0 0
      %417 = vmatprep.subr.bf16.mxu0 0
      %418 = vmatpush1.bf16.msra.mxu0 0
      %419 = vmatprep.subr.bf16.mxu0 0
      %420 = vmatpush1.bf16.msra.mxu0 0
      %421 = vmatprep.subr.bf16.mxu0 0
      %422 = vmatpush1.bf16.msra.mxu0 0
      %423 = vmatprep.subr.bf16.mxu0 0
      %424 = vmatpush1.bf16.msra.mxu0 0
      %425 = vmatprep.subr.bf16.mxu0 0
      %426 = vmatpush1.bf16.msra.mxu0 0
      %427 = vmatprep.mubr.bf16.mxu0 0
      %428 = vmatmul.mubr.bf16.gmra.mrb[0].mxu0 %v306
      %v429 = vpop.f32.mrb[0].mxu0
      %v430 = vadd.f32 0.0, %v429
      %v431 = vpop.f32.mrb[0].mxu0
      %v432 = vpop.f32.mrb[0].mxu0
      %v433 = vadd.f32 0.0, %v432
      %v434 = vpop.f32.mrb[0].mxu0
      %435 = vdwg.mxu0
      %s436 = scalar_lea.vmem %s177, 32
      %437 = vst [vmem:[%s436] sm:$0xff] %v430
      %438 = vst [vmem:[%s436 + $0x8] sm:$0x7] %v433
      %439 = vmatprep.subr.bf16.mxu0 0
      %440 = vmatpush1.bf16.msra.mxu0 %v299
      %441 = vmatprep.subr.bf16.mxu0 0
      %442 = vmatpush1.bf16.msra.mxu0 0
      %443 = vmatprep.subr.bf16.mxu0 0
      %444 = vmatpush1.bf16.msra.mxu0 0
      %445 = vmatprep.subr.bf16.mxu0 0
      %446 = vmatpush1.bf16.msra.mxu0 0
      %447 = vmatprep.subr.bf16.mxu0 0
      %448 = vmatpush1.bf16.msra.mxu0 0
      %449 = vmatprep.subr.bf16.mxu0 0
      %450 = vmatpush1.bf16.msra.mxu0 0
      %451 = vmatprep.subr.bf16.mxu0 0
      %452 = vmatpush1.bf16.msra.mxu0 0
      %453 = vmatprep.subr.bf16.mxu0 0
      %454 = vmatpush1.bf16.msra.mxu0 0
      %455 = vmatprep.subr.bf16.mxu0 0
      %456 = vmatpush1.bf16.msra.mxu0 0
      %457 = vmatprep.subr.bf16.mxu0 0
      %458 = vmatpush1.bf16.msra.mxu0 0
      %459 = vmatprep.subr.bf16.mxu0 0
      %460 = vmatpush1.bf16.msra.mxu0 0
      %461 = vmatprep.subr.bf16.mxu0 0
      %462 = vmatpush1.bf16.msra.mxu0 0
      %463 = vmatprep.subr.bf16.mxu0 0
      %464 = vmatpush1.bf16.msra.mxu0 0
      %465 = vmatprep.subr.bf16.mxu0 0
      %466 = vmatpush1.bf16.msra.mxu0 0
      %467 = vmatprep.subr.bf16.mxu0 0
      %468 = vmatpush1.bf16.msra.mxu0 0
      %469 = vmatprep.subr.bf16.mxu0 0
      %470 = vmatpush1.bf16.msra.mxu0 0
      %471 = vmatprep.mubr.bf16.mxu0 0
      %472 = vmatmul.mubr.bf16.gmra.mrb[0].mxu0 %v306
      %v473 = vpop.f32.mrb[0].mxu0
      %v474 = vadd.f32 0.0, %v473
      %v475 = vpop.f32.mrb[0].mxu0
      %v476 = vpop.f32.mrb[0].mxu0
      %v477 = vadd.f32 0.0, %v476
      %v478 = vpop.f32.mrb[0].mxu0
      %479 = vdwg.mxu0
      %s480 = scalar_lea.vmem %s177, 48
      %481 = vst [vmem:[%s480] sm:$0xff] %v474
      %482 = vst [vmem:[%s480 + $0x8] sm:$0x7] %v477
      %s483 = smul.u32 4, %s14
      %p484 = scmp.lt.s32.totalorder %s483, 7
      %s485 = scalar_select %p484, %s483, 7
      %s486 = smul.addr %s485, 2
      %s487 = smul.addr %s486, 8
      %s488 = scalar_lea.vmem %s3, %s487
      // Predicated region
      $region33: #{fn.1} parent=31 // pred_check
        %p489 = pneg %p100
      $region34: #{fn.1} parent=31 // pred_check_branch
        %491 = sbr.rel (%p489) target = $region36
      $region35: #{fn.1} parent=31 // pred_region
        %s492 = smul.u32 4, %s14
      $region36: #{fn.1} parent=31 // pred_fallthru
        _
    $region32: #{fn.1} parent=5 // pred_fallthru
      _
    %p493 = scmp.le.s32.totalorder 2, %s9
    // Predicated region
    $region37: #{fn.1} parent=5 // pred_check
      %p494 = pneg %p493
    $region38: #{fn.1} parent=5 // pred_check_branch
      %496 = sbr.rel (%p494) target = $region40
    $region39: #{fn.1} parent=5 // pred_region
      %s497 = ssub.s32 %s9, 2
      // Predicated region
      $region41: #{fn.1} parent=39 // pred_check
        %p498 = pneg %p106
      $region42: #{fn.1} parent=39 // pred_check_branch
        %500 = sbr.rel (%p498) target = $region44
      $region43: #{fn.1} parent=39 // pred_region
        %s501 = smul.u32 4, %s15
        %p502 = scmp.lt.s32.totalorder %s501, 7
        %s503 = scalar_select %p502, %s501, 7
        %s504 = smul.addr %s503, 2
        %s505 = smul.addr %s504, 8
        %s506 = scalar_lea.vmem %s3, %s505
      $region44: #{fn.1} parent=39 // pred_fallthru
        _
    $region40: #{fn.1} parent=5 // pred_fallthru
      _
  $region6: #{fn.1} parent=0 // loop_footer
    %s13 = sadd.s32 1, %s9
  $region7: #{fn.1} parent=0 // loop_footer_branch
    %8 = sbr.rel target = $region3
  $region8: #{fn.1} parent=0 // loop_exit
    _

</llo_original>
